<compile_context>
chip_gen: v5e
topology: v5e:2x2
jax: 0.10.0
libtpu: 0.0.40
codegen_flags: <defaults>
</compile_context>

<pallas_src>
import jax
import jax.numpy as jnp
from jax.experimental import pallas as pl
from jax.experimental.pallas import tpu as pltpu

_SUBLANE = 8
_TM_CAP = 512          # big tile -> amortizes ~0.35us/step; still >=2 steps for B>=1024


def _round_up(n, m):
    return ((n + m - 1) // m) * m


def _mlp_softmax_kernel(x_ref, w1_ref, b1_ref, w2_ref, b2_ref, o_ref):
    # hidden = relu(x @ W1 + b1); cast x to bf16 in-kernel (saves an HBM pass),
    # accumulate in f32 on the MXU.
    x = x_ref[...].astype(jnp.bfloat16)
    h = jnp.dot(x, w1_ref[...], preferred_element_type=jnp.float32)
    h = jnp.maximum(h + b1_ref[...], 0.0)                  # (tm, H) + (1, H)

    # logits = h @ W2 + b2 (bf16 operands, f32 accumulation).
    logits = jnp.dot(h.astype(jnp.bfloat16), w2_ref[...],
                     preferred_element_type=jnp.float32)
    logits = logits + b2_ref[...]                          # (tm, O) + (1, O)

    # Numerically stable softmax over dim=1.  Stale rows of a clamped tail
    # block may produce inf/NaN here; they are masked out on writeback.
    m = jnp.max(logits, axis=-1, keepdims=True)
    e = jnp.exp(logits - m)
    denom = jnp.sum(e, axis=-1, keepdims=True)
    o_ref[...] = (e * pl.reciprocal(denom, approx=True)).astype(o_ref.dtype)


def prepare_params(w1, b1, w2, b2):
    """One-time parameter preparation (outside the per-call path)."""
    return (jnp.asarray(w1, jnp.bfloat16),   # (D_in, H)
            jnp.asarray(b1, jnp.float32),    # (1, H)
            jnp.asarray(w2, jnp.bfloat16),   # (H, O)
            jnp.asarray(b2, jnp.float32))    # (1, O)


@jax.jit
def genre_division_forward(x, w1b, b1f, w2b, b2f):
    """x: (B, D_in) f32; w1b: (D_in, H) bf16; b1f: (1, H) f32;
    w2b: (H, O) bf16; b2f: (1, O) f32.  Returns softmax probs (B, O) f32."""
    B, D_in = x.shape
    H = w1b.shape[1]
    O = w2b.shape[1]

    # Batch tile: either the whole (possibly non-multiple-of-8) batch, or a
    # large 8-aligned tile.  No wrapper-side padding; Pallas clamps edge blocks.
    if B <= _TM_CAP:
        tm = B
    else:
        tm = _TM_CAP
    grid = (pl.cdiv(B, tm),)

    # Honest VMEM budget: only x/out tiles are double-buffered; weights have
    # constant index_maps (fetched once, resident).
    vmem_need = (
        2 * tm * D_in * 4        # x tiles (f32, double buffered)
        + D_in * H * 2           # W1 (bf16, resident)
        + H * 4                  # b1 (f32)
        + H * O * 2              # W2 (bf16, resident)
        + O * 4                  # b2 (f32)
        + 2 * tm * O * 4         # output tiles (f32, double buffered)
        + tm * H * 4             # hidden (f32)
        + tm * H * 2             # hidden (bf16) for second matmul
        + tm * O * 4             # logits / exp
    )
    vmem_limit = int(min(max(4 * vmem_need, 4 << 20), 32 << 20))

    cost = pl.CostEstimate(
        flops=2 * B * (D_in * H + H * O),
        transcendentals=B * O,
        bytes_accessed=(B * D_in * 4 + D_in * H * 2 + H * 4
                        + H * O * 2 + O * 4 + B * O * 4),
    )

    return pl.pallas_call(
        _mlp_softmax_kernel,
        out_shape=jax.ShapeDtypeStruct((B, O), jnp.float32),
        grid_spec=pltpu.PrefetchScalarGridSpec(
            num_scalar_prefetch=0,
            grid=grid,
            in_specs=[
                pl.BlockSpec((tm, D_in), lambda i: (i, 0)),   # x tile (streamed)
                pl.BlockSpec((D_in, H), lambda i: (0, 0)),    # W1 (resident)
                pl.BlockSpec((1, H), lambda i: (0, 0)),       # b1
                pl.BlockSpec((H, O), lambda i: (0, 0)),       # W2 (resident)
                pl.BlockSpec((1, O), lambda i: (0, 0)),       # b2
            ],
            out_specs=pl.BlockSpec((tm, O), lambda i: (i, 0)),
        ),
        compiler_params=pltpu.CompilerParams(
            dimension_semantics=("parallel",),
            vmem_limit_bytes=vmem_limit,
        ),
        cost_estimate=cost,
    )(x, w1b, b1f, w2b, b2f)


def _reference_bf16(x, w1, b1, w2, b2):
    """Emulates the kernel's bf16-operand / f32-accumulate math."""
    xb = x.astype(jnp.bfloat16).astype(jnp.float32)
    w1b = w1.astype(jnp.bfloat16).astype(jnp.float32)
    h = jnp.maximum(xb @ w1b + b1, 0.0)
    hb = h.astype(jnp.bfloat16).astype(jnp.float32)
    w2b = w2.astype(jnp.bfloat16).astype(jnp.float32)
    logits = hb @ w2b + b2
    return jax.nn.softmax(logits, axis=1)


def _reference_f32(x, w1, b1, w2, b2):
    h = jnp.maximum(x @ w1 + b1, 0.0)
    logits = h @ w2 + b2
    return jax.nn.softmax(logits, axis=1)


if __name__ == "__main__":
    # Small shapes consistent with the module's forward.
    batch = 8
    input_dim = 128     # TF-IDF-like feature dim in the original script
    hidden_dim = 256    # as in the module
    output_dim = 8      # number of genres

    key = jax.random.PRNGKey(0)
    kx, k1, k2, k3, k4 = jax.random.split(key, 5)

    x = jax.random.normal(kx, (batch, input_dim), dtype=jnp.float32)

    # Deterministic "init" mimicking nn.Linear's uniform(-1/sqrt(fan_in), ...)
    bound1 = 1.0 / jnp.sqrt(input_dim)
    w1 = jax.random.uniform(k1, (input_dim, hidden_dim), jnp.float32,
                            -bound1, bound1)
    b1 = jax.random.uniform(k2, (1, hidden_dim), jnp.float32, -bound1, bound1)

    bound2 = 1.0 / jnp.sqrt(hidden_dim)
    w2 = jax.random.uniform(k3, (hidden_dim, output_dim), jnp.float32,
                            -bound2, bound2)
    b2 = jax.random.uniform(k4, (1, output_dim), jnp.float32, -bound2, bound2)

    # One-time parameter prep (bf16 weights, f32 biases).
    w1b, b1f, w2b, b2f = prepare_params(w1, b1, w2, b2)

    out = genre_division_forward(x, w1b, b1f, w2b, b2f)
    out = jax.block_until_ready(out)
    assert out.shape == (batch, output_dim)

    ref_bf16 = _reference_bf16(x, w1, b1, w2, b2)
    ref_f32 = _reference_f32(x, w1, b1, w2, b2)
    assert jnp.allclose(out, ref_bf16, atol=5e-3, rtol=5e-3), \
        "mismatch vs bf16 reference"
    assert jnp.allclose(out, ref_f32, atol=3e-2, rtol=3e-2), \
        "mismatch vs f32 reference"
    assert jnp.allclose(jnp.sum(out, axis=1), 1.0, atol=5e-3)

    # Check 2: batch > tile cap and not a multiple of the tile -> exercises the
    # multi-step grid and the clamped/masked edge block (no wrapper padding).
    xb_big = jax.random.normal(jax.random.PRNGKey(1), (600, input_dim),
                               dtype=jnp.float32)
    out_big = jax.block_until_ready(
        genre_division_forward(xb_big, w1b, b1f, w2b, b2f))
    ref_big = _reference_bf16(xb_big, w1, b1, w2, b2)
    assert out_big.shape == (600, output_dim)
    assert jnp.allclose(out_big, ref_big, atol=5e-3, rtol=5e-3), \
        "mismatch vs bf16 reference (large batch)"
    assert jnp.allclose(jnp.sum(out_big, axis=1), 1.0, atol=5e-3)

    # Check 3: small non-8-multiple batch (block == full array dims path).
    x_small = jax.random.normal(jax.random.PRNGKey(2), (3, input_dim),
                                dtype=jnp.float32)
    out_small = jax.block_until_ready(
        genre_division_forward(x_small, w1b, b1f, w2b, b2f))
    ref_small = _reference_bf16(x_small, w1, b1, w2, b2)
    assert out_small.shape == (3, output_dim)
    assert jnp.allclose(out_small, ref_small, atol=5e-3, rtol=5e-3), \
        "mismatch vs bf16 reference (small batch)"

    print("KERNEL_OK")
</pallas_src>

<mosaic_0001>
module attributes {stable_mosaic.version = 11 : i64} {
  func.func @_mlp_softmax_kernel(%arg0: i32, %arg1: memref<8x128xf32, #tpu.memory_space<vmem>>, %arg2: memref<128x256xbf16, #tpu.memory_space<vmem>>, %arg3: memref<1x256xf32, #tpu.memory_space<vmem>>, %arg4: memref<256x8xbf16, #tpu.memory_space<vmem>>, %arg5: memref<1x8xf32, #tpu.memory_space<vmem>>, %arg6: memref<8x8xf32, #tpu.memory_space<vmem>>) attributes {dimension_semantics = [#tpu.dimension_semantics<parallel>], iteration_bounds = array<i64: 1>, scalar_prefetch = 0 : i64, scratch_operands = 0 : i64, tpu.core_type = #tpu.core_type<tc>, window_params = [{transform_indices = @transform_0, window_bounds = array<i64: 8, 128>}, {pipeline_mode = #tpu.pipeline_mode<synchronous>, transform_indices = @transform_1, window_bounds = array<i64: 128, 256>}, {pipeline_mode = #tpu.pipeline_mode<synchronous>, transform_indices = @transform_2, window_bounds = array<i64: 1, 256>}, {pipeline_mode = #tpu.pipeline_mode<synchronous>, transform_indices = @transform_3, window_bounds = array<i64: 256, 8>}, {pipeline_mode = #tpu.pipeline_mode<synchronous>, transform_indices = @transform_4, window_bounds = array<i64: 1, 8>}, {transform_indices = @transform_5, window_bounds = array<i64: 8, 8>}]} {
    %c0 = arith.constant 0 : index
    %c0_0 = arith.constant 0 : index
    %0 = vector.load %arg1[%c0, %c0_0] : memref<8x128xf32, #tpu.memory_space<vmem>>, vector<8x128xf32>
    %1 = arith.truncf %0 : vector<8x128xf32> to vector<8x128xbf16>
    %c0_1 = arith.constant 0 : index
    %c0_2 = arith.constant 0 : index
    %2 = vector.load %arg2[%c0_1, %c0_2] : memref<128x256xbf16, #tpu.memory_space<vmem>>, vector<128x256xbf16>
    %cst = arith.constant dense<0.000000e+00> : vector<8x256xf32>
    %3 = tpu.matmul %1, %2, %cst {dimension_numbers = #tpu.dot_dimension_numbers<[1], [0], [0], [1], [0, 0, 1, 1], [], []>} : vector<8x128xbf16>, vector<128x256xbf16>, vector<8x256xf32> -> vector<8x256xf32>
    %c0_3 = arith.constant 0 : index
    %c0_4 = arith.constant 0 : index
    %4 = vector.load %arg3[%c0_3, %c0_4] : memref<1x256xf32, #tpu.memory_space<vmem>>, vector<1x256xf32>
    %5 = vector.broadcast %4 : vector<1x256xf32> to vector<8x256xf32>
    %6 = arith.addf %3, %5 : vector<8x256xf32>
    %cst_5 = arith.constant 0.000000e+00 : f32
    %7 = vector.broadcast %cst_5 : f32 to vector<8x256xf32>
    %8 = arith.maximumf %6, %7 : vector<8x256xf32>
    %9 = arith.truncf %8 : vector<8x256xf32> to vector<8x256xbf16>
    %c0_6 = arith.constant 0 : index
    %c0_7 = arith.constant 0 : index
    %10 = vector.load %arg4[%c0_6, %c0_7] : memref<256x8xbf16, #tpu.memory_space<vmem>>, vector<256x8xbf16>
    %cst_8 = arith.constant dense<0.000000e+00> : vector<8x8xf32>
    %11 = tpu.matmul %9, %10, %cst_8 {dimension_numbers = #tpu.dot_dimension_numbers<[1], [0], [0], [1], [0, 0, 1, 1], [], []>} : vector<8x256xbf16>, vector<256x8xbf16>, vector<8x8xf32> -> vector<8x8xf32>
    %c0_9 = arith.constant 0 : index
    %c0_10 = arith.constant 0 : index
    %12 = vector.load %arg5[%c0_9, %c0_10] : memref<1x8xf32, #tpu.memory_space<vmem>>, vector<1x8xf32>
    %13 = vector.broadcast %12 : vector<1x8xf32> to vector<8x8xf32>
    %14 = arith.addf %11, %13 : vector<8x8xf32>
    %cst_11 = arith.constant dense<0xFF800000> : vector<8xf32>
    %15 = vector.multi_reduction <maximumf>, %14, %cst_11 [1] : vector<8x8xf32> to vector<8xf32>
    %16 = vector.shape_cast %15 : vector<8xf32> to vector<8x1xf32>
    %17 = vector.broadcast %16 : vector<8x1xf32> to vector<8x8xf32>
    %18 = arith.subf %14, %17 : vector<8x8xf32>
    %19 = math.exp %18 : vector<8x8xf32>
    %cst_12 = arith.constant dense<0.000000e+00> : vector<8xf32>
    %20 = vector.multi_reduction <add>, %19, %cst_12 [1] : vector<8x8xf32> to vector<8xf32>
    %21 = vector.shape_cast %20 : vector<8xf32> to vector<8x1xf32>
    %22 = tpu.reciprocal %21 {approx = true} : vector<8x1xf32> -> vector<8x1xf32>
    %23 = vector.broadcast %22 : vector<8x1xf32> to vector<8x8xf32>
    %24 = arith.mulf %19, %23 : vector<8x8xf32>
    %c0_13 = arith.constant 0 : index
    %c0_14 = arith.constant 0 : index
    %25 = vector.load %arg6[%c0_13, %c0_14] : memref<8x8xf32, #tpu.memory_space<vmem>>, vector<8x8xf32>
    tpu.vector_store %arg6[%c0_13, %c0_14], %24 {strides = array<i32>} : memref<8x8xf32, #tpu.memory_space<vmem>>, vector<8x8xf32>,
    return
  }
  func.func @transform_0(%arg0: i32) -> (i32, i32) {
    %c0_i32 = arith.constant 0 : i32
    %c0_i32_0 = arith.constant 0 : i32
    return %arg0, %c0_i32 : i32, i32
  }
  func.func @transform_1(%arg0: i32) -> (i32, i32) {
    %c0_i32 = arith.constant 0 : i32
    %c0_i32_0 = arith.constant 0 : i32
    %c0_i32_1 = arith.constant 0 : i32
    return %c0_i32, %c0_i32_0 : i32, i32
  }
  func.func @transform_2(%arg0: i32) -> (i32, i32) {
    %c0_i32 = arith.constant 0 : i32
    %c0_i32_0 = arith.constant 0 : i32
    %c0_i32_1 = arith.constant 0 : i32
    return %c0_i32, %c0_i32_0 : i32, i32
  }
  func.func @transform_3(%arg0: i32) -> (i32, i32) {
    %c0_i32 = arith.constant 0 : i32
    %c0_i32_0 = arith.constant 0 : i32
    %c0_i32_1 = arith.constant 0 : i32
    return %c0_i32, %c0_i32_0 : i32, i32
  }
  func.func @transform_4(%arg0: i32) -> (i32, i32) {
    %c0_i32 = arith.constant 0 : i32
    %c0_i32_0 = arith.constant 0 : i32
    %c0_i32_1 = arith.constant 0 : i32
    return %c0_i32, %c0_i32_0 : i32, i32
  }
  func.func @transform_5(%arg0: i32) -> (i32, i32) {
    %c0_i32 = arith.constant 0 : i32
    %c0_i32_0 = arith.constant 0 : i32
    return %arg0, %c0_i32 : i32, i32
  }
}

</mosaic_0001>

<llo_original>
// kernel: genre_division_forward.1
$region0: #{genre_division_forward.1}
  #allocation0 [shape = 'u32[]', space=smem, size = 0x4, offset = 0x4, fixed_abs, tag = 'smem constant byte address 0x4 - core index']
  #allocation1 [shape = 'u32[72,128]{1,0:T(1,128)}', space=vmem, size = 0x9000, scoped, tag = 'internal scratch']
  %s0 = inlined_call_operand.vmem [shape: f32[8,128], index: 0, kind: input, shape index: {}]
  %s1 = inlined_call_operand.vmem [shape: bf16[128,256], index: 1, kind: input, shape index: {}]
  %s2 = inlined_call_operand.hbm [shape: f32[1,256], index: 2, kind: input, shape index: {}]
  %s3 = inlined_call_operand.vmem [shape: bf16[256,8], index: 3, kind: input, shape index: {}]
  %s4 = inlined_call_operand.vmem [shape: f32[1,8], index: 4, kind: input, shape index: {}]
  %s5 = inlined_call_operand.hbm [shape: f32[8,8], index: 5, kind: output, shape index: {}]
  %s6 = sld [smem:[#allocation0]]
  $region34: #{genre_division_forward.1} parent=0
    _
  %s8 = ssub.s32 1, %s6
  %s9 = scalar_select 0, %s8, %s6
  $region1: #{genre_division_forward.1} parent=0
    #allocation2 [shape = 'u8[1024]{0}', space=vmem, size = 0x400, scoped, tag = 'input window, operand 2, single buffered']
    #allocation3 [shape = 's32[1]{0}', space=sflag, size = 0x4, scoped, tag = 'scoped memory for genre_division_forward.1']
    #allocation4 [shape = 's32[1]{0}', space=sflag, size = 0x4, scoped, tag = 'scoped memory for genre_division_forward.1']
    #allocation5 [shape = 'u8[4096]{0}', space=vmem, size = 0x1000, scoped, tag = 'output window, operand 0, single buffered']
    %10 = vsyncpa [#allocation3], 0
    %11 = vsyncpa [#allocation4], 0
    // Predicated region
    $region2: #{genre_division_forward.1} parent=1 // pred_check
      _
    $region3: #{genre_division_forward.1} parent=1 // pred_check_branch
      %13 = sbr.rel (0) target = $region5
    $region4: #{genre_division_forward.1} parent=1 // pred_region
      _
    $region5: #{genre_division_forward.1} parent=1 // pred_fallthru
      _
    // Predicated region
    $region6: #{genre_division_forward.1} parent=1 // pred_check
      _
    $region7: #{genre_division_forward.1} parent=1 // pred_check_branch
      %15 = sbr.rel (0) target = $region9
    $region8: #{genre_division_forward.1} parent=1 // pred_region
      _
    $region9: #{genre_division_forward.1} parent=1 // pred_fallthru
      _
    // Predicated region
    $region10: #{genre_division_forward.1} parent=1 // pred_check
      _
    $region11: #{genre_division_forward.1} parent=1 // pred_check_branch
      %17 = sbr.rel (0) target = $region13
    $region12: #{genre_division_forward.1} parent=1 // pred_region
      %19 = vsyncadd [#allocation3], 0
      %s21 = sshll.u32 %s2, 4
      %s22 = int_to_ptr.hbm [resolvable:$true] %s21
      %s23 = sshll.u32 [#allocation2], 4
      %s24 = int_to_ptr.vmem [resolvable:$true] %s23
      %26 = dma.hbm_to_vmem [thread:$0]  %s22, 32, %s24, [#allocation3]
    $region13: #{genre_division_forward.1} parent=1 // pred_fallthru
      _
    // Predicated region
    $region14: #{genre_division_forward.1} parent=1 // pred_check
      _
    $region15: #{genre_division_forward.1} parent=1 // pred_check_branch
      %28 = sbr.rel (0) target = $region17
    $region16: #{genre_division_forward.1} parent=1 // pred_region
      _
    $region17: #{genre_division_forward.1} parent=1 // pred_fallthru
      _
    // Predicated region
    $region18: #{genre_division_forward.1} parent=1 // pred_check
      _
    $region19: #{genre_division_forward.1} parent=1 // pred_check_branch
      %30 = sbr.rel (0) target = $region21
    $region20: #{genre_division_forward.1} parent=1 // pred_region
      _
    $region21: #{genre_division_forward.1} parent=1 // pred_fallthru
      _
    // Predicated region
    $region22: #{genre_division_forward.1} parent=1 // pred_check
      _
    $region23: #{genre_division_forward.1} parent=1 // pred_check_branch
      %32 = sbr.rel (0) target = $region25
    $region24: #{genre_division_forward.1} parent=1 // pred_region
      %34 = dma.done [#allocation3], 32
    $region25: #{genre_division_forward.1} parent=1 // pred_fallthru
      _
    %v35 = vld [vmem:[%s0] sm:$0xff]
    %v36 = vpack.c.bf16 %v35, %v35
    %v37 = vld [vmem:[%s1] sm:$0xff]
    %v38 = vld [vmem:[%s1 + $0x8] sm:$0xff]
    %v39 = vld [vmem:[%s1 + $0x10] sm:$0xff]
    %v40 = vld [vmem:[%s1 + $0x18] sm:$0xff]
    %v41 = vld [vmem:[%s1 + $0x20] sm:$0xff]
    %v42 = vld [vmem:[%s1 + $0x28] sm:$0xff]
    %v43 = vld [vmem:[%s1 + $0x30] sm:$0xff]
    %v44 = vld [vmem:[%s1 + $0x38] sm:$0xff]
    %v45 = vld [vmem:[%s1 + $0x40] sm:$0xff]
    %v46 = vld [vmem:[%s1 + $0x48] sm:$0xff]
    %v47 = vld [vmem:[%s1 + $0x50] sm:$0xff]
    %v48 = vld [vmem:[%s1 + $0x58] sm:$0xff]
    %v49 = vld [vmem:[%s1 + $0x60] sm:$0xff]
    %v50 = vld [vmem:[%s1 + $0x68] sm:$0xff]
    %v51 = vld [vmem:[%s1 + $0x70] sm:$0xff]
    %v52 = vld [vmem:[%s1 + $0x78] sm:$0xff]
    %v53 = vld [vmem:[#allocation2] sm:$0x3]
    %v55 = vperm.slane %v53, 0
    %v56 = vperm.slane %v53, 1
    %v75 = vunpack.c.l.b16 %v37
    %v76 = vunpack.c.h.b16 %v37
    %v77 = vunpack.c.l.b16 %v38
    %v78 = vunpack.c.h.b16 %v38
    %v79 = vunpack.c.l.b16 %v39
    %v80 = vunpack.c.h.b16 %v39
    %v81 = vunpack.c.l.b16 %v40
    %v82 = vunpack.c.h.b16 %v40
    %v83 = vunpack.c.l.b16 %v41
    %v84 = vunpack.c.h.b16 %v41
    %v85 = vunpack.c.l.b16 %v42
    %v86 = vunpack.c.h.b16 %v42
    %v87 = vunpack.c.l.b16 %v43
    %v88 = vunpack.c.h.b16 %v43
    %v89 = vunpack.c.l.b16 %v44
    %v90 = vunpack.c.h.b16 %v44
    %v91 = vunpack.c.l.b16 %v45
    %v92 = vunpack.c.h.b16 %v45
    %v93 = vunpack.c.l.b16 %v46
    %v94 = vunpack.c.h.b16 %v46
    %v95 = vunpack.c.l.b16 %v47
    %v96 = vunpack.c.h.b16 %v47
    %v97 = vunpack.c.l.b16 %v48
    %v98 = vunpack.c.h.b16 %v48
    %v99 = vunpack.c.l.b16 %v49
    %v100 = vunpack.c.h.b16 %v49
    %v101 = vunpack.c.l.b16 %v50
    %v102 = vunpack.c.h.b16 %v50
    %v103 = vunpack.c.l.b16 %v51
    %v104 = vunpack.c.h.b16 %v51
    %v105 = vunpack.c.l.b16 %v52
    %v106 = vunpack.c.h.b16 %v52
    %v107 = vpack.c.b16 %v77, %v75
    %v108 = vpack.c.b16 %v78, %v76
    %v109 = vpack.c.b16 %v81, %v79
    %v110 = vpack.c.b16 %v82, %v80
    %v111 = vpack.c.b16 %v85, %v83
    %v112 = vpack.c.b16 %v86, %v84
    %v113 = vpack.c.b16 %v89, %v87
    %v114 = vpack.c.b16 %v90, %v88
    %v115 = vpack.c.b16 %v93, %v91
    %v116 = vpack.c.b16 %v94, %v92
    %v117 = vpack.c.b16 %v97, %v95
    %v118 = vpack.c.b16 %v98, %v96
    %v119 = vpack.c.b16 %v101, %v99
    %v120 = vpack.c.b16 %v102, %v100
    %v121 = vpack.c.b16 %v105, %v103
    %v122 = vpack.c.b16 %v106, %v104
    %139 = vmatpush.bf16.msra.mxu0 %v121
    %140 = vmatpush.bf16.msra.mxu0 %v119
    %141 = vmatpush.bf16.msra.mxu0 %v117
    %142 = vmatpush.bf16.msra.mxu0 %v115
    %143 = vmatpush.bf16.msra.mxu0 %v113
    %144 = vmatpush.bf16.msra.mxu0 %v111
    %145 = vmatpush.bf16.msra.mxu0 %v109
    %146 = vmatpush.bf16.msra.mxu0 %v107
    %147 = vmatmul.bf16.gmra.mxu0 %v36
    %v148 = vpop.f32.mrf.mxu0
    %v149 = vadd.f32 %v55, %v148
    %v150 = vpop.f32.mrf.mxu0
    %151 = vdwg.mxu0
    %152 = vmatpush.bf16.msra.mxu0 %v122
    %153 = vmatpush.bf16.msra.mxu0 %v120
    %154 = vmatpush.bf16.msra.mxu0 %v118
    %155 = vmatpush.bf16.msra.mxu0 %v116
    %156 = vmatpush.bf16.msra.mxu0 %v114
    %157 = vmatpush.bf16.msra.mxu0 %v112
    %158 = vmatpush.bf16.msra.mxu0 %v110
    %159 = vmatpush.bf16.msra.mxu0 %v108
    %160 = vmatmul.bf16.gmra.mxu0 %v36
    %v161 = vpop.f32.mrf.mxu0
    %v162 = vadd.f32 %v56, %v161
    %v163 = vpop.f32.mrf.mxu0
    %164 = vdwg.mxu0
    %v165 = vmax.f32 %v149, 0.0
    %v166 = vmax.f32 %v162, 0.0
    %v167 = vpack.c.bf16 %v165, %v165
    %v168 = vpack.c.bf16 %v166, %v166
    %v169 = vld [vmem:[%s3] sm:$0xf]
    %v170 = vld [vmem:[%s3 + $0x4] sm:$0xf]
    %v171 = vld [vmem:[%s3 + $0x8] sm:$0xf]
    %v172 = vld [vmem:[%s3 + $0xc] sm:$0xf]
    %v173 = vld [vmem:[%s3 + $0x10] sm:$0xf]
    %v174 = vld [vmem:[%s3 + $0x14] sm:$0xf]
    %v175 = vld [vmem:[%s3 + $0x18] sm:$0xf]
    %v176 = vld [vmem:[%s3 + $0x1c] sm:$0xf]
    %v177 = vld [vmem:[%s3 + $0x20] sm:$0xf]
    %v178 = vld [vmem:[%s3 + $0x24] sm:$0xf]
    %v179 = vld [vmem:[%s3 + $0x28] sm:$0xf]
    %v180 = vld [vmem:[%s3 + $0x2c] sm:$0xf]
    %v181 = vld [vmem:[%s3 + $0x30] sm:$0xf]
    %v182 = vld [vmem:[%s3 + $0x34] sm:$0xf]
    %v183 = vld [vmem:[%s3 + $0x38] sm:$0xf]
    %v184 = vld [vmem:[%s3 + $0x3c] sm:$0xf]
    %v185 = vld [vmem:[%s3 + $0x40] sm:$0xf]
    %v186 = vld [vmem:[%s3 + $0x44] sm:$0xf]
    %v187 = vld [vmem:[%s3 + $0x48] sm:$0xf]
    %v188 = vld [vmem:[%s3 + $0x4c] sm:$0xf]
    %v189 = vld [vmem:[%s3 + $0x50] sm:$0xf]
    %v190 = vld [vmem:[%s3 + $0x54] sm:$0xf]
    %v191 = vld [vmem:[%s3 + $0x58] sm:$0xf]
    %v192 = vld [vmem:[%s3 + $0x5c] sm:$0xf]
    %v193 = vld [vmem:[%s3 + $0x60] sm:$0xf]
    %v194 = vld [vmem:[%s3 + $0x64] sm:$0xf]
    %v195 = vld [vmem:[%s3 + $0x68] sm:$0xf]
    %v196 = vld [vmem:[%s3 + $0x6c] sm:$0xf]
    %v197 = vld [vmem:[%s3 + $0x70] sm:$0xf]
    %v198 = vld [vmem:[%s3 + $0x74] sm:$0xf]
    %v199 = vld [vmem:[%s3 + $0x78] sm:$0xf]
    %v200 = vld [vmem:[%s3 + $0x7c] sm:$0xf]
    %v201 = vld [vmem:[%s4] sm:$0x1]
    %v203 = vperm.slane %v201, 0
    %v237 = vunpack.c.l.b16 %v169
    %v238 = vunpack.c.l.b16 %v170
    %v239 = vunpack.c.l.b16 %v171
    %v240 = vunpack.c.l.b16 %v172
    %v241 = vunpack.c.l.b16 %v173
    %v242 = vunpack.c.l.b16 %v174
    %v243 = vunpack.c.l.b16 %v175
    %v244 = vunpack.c.l.b16 %v176
    %v245 = vunpack.c.l.b16 %v177
    %v246 = vunpack.c.l.b16 %v178
    %v247 = vunpack.c.l.b16 %v179
    %v248 = vunpack.c.l.b16 %v180
    %v249 = vunpack.c.l.b16 %v181
    %v250 = vunpack.c.l.b16 %v182
    %v251 = vunpack.c.l.b16 %v183
    %v252 = vunpack.c.l.b16 %v184
    %v253 = vunpack.c.l.b16 %v185
    %v254 = vunpack.c.l.b16 %v186
    %v255 = vunpack.c.l.b16 %v187
    %v256 = vunpack.c.l.b16 %v188
    %v257 = vunpack.c.l.b16 %v189
    %v258 = vunpack.c.l.b16 %v190
    %v259 = vunpack.c.l.b16 %v191
    %v260 = vunpack.c.l.b16 %v192
    %v261 = vunpack.c.l.b16 %v193
    %v262 = vunpack.c.l.b16 %v194
    %v263 = vunpack.c.l.b16 %v195
    %v264 = vunpack.c.l.b16 %v196
    %v265 = vunpack.c.l.b16 %v197
    %v266 = vunpack.c.l.b16 %v198
    %v267 = vunpack.c.l.b16 %v199
    %v268 = vunpack.c.l.b16 %v200
    %v269 = vpack.c.b16 %v238, %v237
    %v270 = vpack.c.b16 %v240, %v239
    %v271 = vpack.c.b16 %v242, %v241
    %v272 = vpack.c.b16 %v244, %v243
    %v273 = vpack.c.b16 %v246, %v245
    %v274 = vpack.c.b16 %v248, %v247
    %v275 = vpack.c.b16 %v250, %v249
    %v276 = vpack.c.b16 %v252, %v251
    %v277 = vpack.c.b16 %v254, %v253
    %v278 = vpack.c.b16 %v256, %v255
    %v279 = vpack.c.b16 %v258, %v257
    %v280 = vpack.c.b16 %v260, %v259
    %v281 = vpack.c.b16 %v262, %v261
    %v282 = vpack.c.b16 %v264, %v263
    %v283 = vpack.c.b16 %v266, %v265
    %v284 = vpack.c.b16 %v268, %v267
    %301 = vmatpush.bf16.msra.mxu0 %v276
    %302 = vmatpush.bf16.msra.mxu0 %v275
    %303 = vmatpush.bf16.msra.mxu0 %v274
    %304 = vmatpush.bf16.msra.mxu0 %v273
    %305 = vmatpush.bf16.msra.mxu0 %v272
    %306 = vmatpush.bf16.msra.mxu0 %v271
    %307 = vmatpush.bf16.msra.mxu0 %v270
    %308 = vmatpush.bf16.msra.mxu0 %v269
    %309 = vmatmul.bf16.gmra.mxu0 %v167
    %v310 = vpop.f32.mrf.mxu0
    %v311 = vadd.f32 %v203, %v310
    %v312 = vpop.f32.mrf.mxu0
    %313 = vdwg.mxu0
    %314 = vmatpush.bf16.msra.mxu0 %v284
    %315 = vmatpush.bf16.msra.mxu0 %v283
    %316 = vmatpush.bf16.msra.mxu0 %v282
    %317 = vmatpush.bf16.msra.mxu0 %v281
    %318 = vmatpush.bf16.msra.mxu0 %v280
    %319 = vmatpush.bf16.msra.mxu0 %v279
    %320 = vmatpush.bf16.msra.mxu0 %v278
    %321 = vmatpush.bf16.msra.mxu0 %v277
    %322 = vmatmul.bf16.gmra.mxu0 %v168
    %v323 = vpop.f32.mrf.mxu0
    %v324 = vadd.f32 %v311, %v323
    %v325 = vpop.f32.mrf.mxu0
    %326 = vdwg.mxu0
    %vm327 = vcmask 64512
    %v328 = vsel %vm327, %v324, -inf
    %329 = vmax.xlane.f32.xlu0 %v328
    %v330 = vpop.xlane.xlu0 %329
    %v331 = vsub.f32 %v324, %v330
    %v332 = vmul.f32 %v331, 1.442695
    %v333 = vpow.pop %v332
    %v334 = vsel %vm327, %v333, 0.0
    %335 = vadd.xlane.f32.xlu0 %v334
    %v336 = vpop.xlane.xlu0 %335
    %v337 = vrcp.pop %v336
    %v338 = vmul.f32 %v333, %v337
    %339 = vst.msk [vmem:[#allocation5] sm:$0xff] %vm327, %v338
    // Predicated region
    $region26: #{genre_division_forward.1} parent=1 // pred_check
      _
    $region27: #{genre_division_forward.1} parent=1 // pred_check_branch
      %341 = sbr.rel (0) target = $region29
    $region28: #{genre_division_forward.1} parent=1 // pred_region
      %343 = vsyncadd [#allocation4], 0
      %s345 = sshll.u32 [#allocation5], 4
      %s346 = int_to_ptr.vmem [resolvable:$true] %s345
      %s347 = sshll.u32 %s5, 4
      %s348 = int_to_ptr.hbm [resolvable:$true] %s347
      %350 = dma.vmem_to_hbm [thread:$0]  %s346, 128, %s348, [#allocation4]
    $region29: #{genre_division_forward.1} parent=1 // pred_fallthru
      _
    // Predicated region
    $region30: #{genre_division_forward.1} parent=1 // pred_check
      _
    $region31: #{genre_division_forward.1} parent=1 // pred_check_branch
      %352 = sbr.rel (0) target = $region33
    $region32: #{genre_division_forward.1} parent=1 // pred_region
      %354 = dma.done [#allocation4], 128
    $region33: #{genre_division_forward.1} parent=1 // pred_fallthru
      _
    %355 = vsyncpa [#allocation3], 1
    %356 = vsyncpa [#allocation4], 1

</llo_original>
